<compile_context>
chip_gen: v7x
topology: tpu7x:2x2x1
jax: 0.10.0
libtpu: 0.0.40
codegen_flags: <defaults>
</compile_context>

<pallas_src>
import numpy as np
import jax
import jax.numpy as jnp
from jax.experimental import pallas as pl
from jax.experimental.pallas import tpu as pltpu

BN_EPS = 1e-5


def _round_up(v, m):
    return (v + m - 1) // m * m


def _pad2(a, rows, cols):
    return jnp.pad(a, ((0, rows - a.shape[0]), (0, cols - a.shape[1])))


# ---------------------------------------------------------------------------
# Kernels
# ---------------------------------------------------------------------------
def input_stage_kernel(x_ref, w_ref, s_ref, t_ref, h_ref):
    # h0[row_tile] = relu(scale0 * (x @ W_in) + shift0'), with b_in folded into shift0'.
    h = jnp.dot(x_ref[...], w_ref[...], preferred_element_type=jnp.float32)
    h_ref[...] = jnp.maximum(h * s_ref[...] + t_ref[...], 0.0).astype(h_ref.dtype)


def prop_fused_kernel(scal_ref, a_ref, h0_hbm, s_ref, t_ref,
                      acc_ref, h_buf, mm_acc):
    # grid = (layer i, row tile r, reduction tile k)   -- all "arbitrary" (see header).
    i = pl.program_id(0)
    r = pl.program_id(1)
    k = pl.program_id(2)
    nk = pl.num_programs(2)
    tm = mm_acc.shape[0]
    tk = a_ref.shape[2]

    # Very first grid step: zero the resident accumulator and fetch h0 into the
    # ping-pong scratch with a single HBM->VMEM DMA.
    @pl.when((i == 0) & (r == 0) & (k == 0))
    def _():
        acc_ref[...] = jnp.zeros_like(acc_ref)
        pltpu.sync_copy(h0_hbm, h_buf.at[0])

    # Per-(layer, row-tile) matmul accumulator, reset at the start of the k sweep.
    @pl.when(k == 0)
    def _():
        mm_acc[...] = jnp.zeros_like(mm_acc)

    cur = i % 2                      # slot holding h of the current layer
    h_cur = h_buf.at[cur]            # (Np, Hp) bf16 ref view (no load)

    col = pl.multiple_of(k * tk, tk)
    mm_acc[...] += jnp.dot(a_ref[0], h_cur[pl.ds(col, tk), :],
                           preferred_element_type=jnp.float32)

    # End of the k sweep: finish h_new for this row tile, apply the decoupled-GCN
    # identity mix + BN + ReLU, accumulate the layer-weighted hidden, stash h_new.
    @pl.when(k == nk - 1)
    def _():
        row = pl.multiple_of(r * tm, tm)
        h_new = mm_acc[...]                                    # (tm, Hp) f32
        h_old = h_cur[pl.ds(row, tm), :].astype(jnp.float32)
        iw = scal_ref[i, 0]                                    # sigmoid(identity_map_weight[i])
        lw = scal_ref[i, 1]                                    # softmax(layer_weight)[i]
        h_w = iw * h_old + (1.0 - iw) * h_new
        h_w = jnp.maximum(h_w * s_ref[0] + t_ref[0], 0.0)      # BN_{i+1} + ReLU
        acc_ref[pl.ds(row, tm), :] += lw * h_w
        h_nxt = h_buf.at[1 - cur]
        h_nxt[pl.ds(row, tm), :] = h_new.astype(h_buf.dtype)


def output_stage_kernel(acc_ref, w_ref, b_ref, o_ref):
    o_ref[...] = (jnp.dot(acc_ref[...], w_ref[...], preferred_element_type=jnp.float32)
                  + b_ref[...])


# ---------------------------------------------------------------------------
# Wrapper
# ---------------------------------------------------------------------------
def decoupled_gcn_forward(params, nodeblocks, x, *, tm=256, tk=256):
    N, F = x.shape
    H = params["w_in"].shape[1]
    C = params["w_out"].shape[1]
    L = nodeblocks.shape[0]

    # Lane-dense padding (multiples of 128) + row padding to the tile grid.
    Fp = _round_up(F, 128)
    Hp = _round_up(H, 128)
    Cp = _round_up(C, 128)
    Np = _round_up(N, int(np.lcm(tm, tk)))
    R = Np // tm
    K = Np // tk

    # --- fold BatchNorm (inference / running stats) into a single affine --------------
    scale = params["bn_gamma"] * jax.lax.rsqrt(params["bn_var"] + BN_EPS)   # (L+1,1,H)
    shift = params["bn_beta"] - params["bn_mean"] * scale
    scale_p = jnp.pad(scale, ((0, 0), (0, 0), (0, Hp - H)))                 # padded lanes -> 0
    shift_p = jnp.pad(shift, ((0, 0), (0, 0), (0, Hp - H)))

    b_in_p = _pad2(params["b_in"], 1, Hp)
    bn0_scale = scale_p[0]                                                  # (1, Hp)
    bn0_shift = shift_p[0] + scale_p[0] * b_in_p                            # fold b_in into BN0
    bn_scale_prop, bn_shift_prop = scale_p[1:], shift_p[1:]                 # (L, 1, Hp)

    # --- padded / narrowed operands ----------------------------------------------------
    x_p = _pad2(x.astype(jnp.float32), Np, Fp)
    a_p = jnp.pad(nodeblocks, ((0, 0), (0, Np - N), (0, Np - N))).astype(jnp.bfloat16)
    w_in_p = _pad2(params["w_in"], Fp, Hp)
    w_out_p = _pad2(params["w_out"], Hp, Cp)
    b_out_p = _pad2(params["b_out"], 1, Cp)

    iw = jax.nn.sigmoid(params["identity_map_weight"])            # (L,)
    lw = jax.nn.softmax(params["layer_weight"], axis=0)[:L]       # first L of L+1 entries
    scal = jnp.stack([iw, lw], axis=1).astype(jnp.float32)        # (L, 2) -> SMEM

    # --- stage 1: h0 = relu(BN0(x @ W_in + b_in)), row-tiled, row axis parallel --------
    h0 = pl.pallas_call(
        input_stage_kernel,
        grid=(R,),
        in_specs=[
            pl.BlockSpec((tm, Fp), lambda r: (r, 0)),
            pl.BlockSpec((Fp, Hp), lambda r: (0, 0)),
            pl.BlockSpec((1, Hp), lambda r: (0, 0)),
            pl.BlockSpec((1, Hp), lambda r: (0, 0)),
        ],
        out_specs=pl.BlockSpec((tm, Hp), lambda r: (r, 0)),
        out_shape=jax.ShapeDtypeStruct((Np, Hp), jnp.bfloat16),
        compiler_params=pltpu.CompilerParams(dimension_semantics=("parallel",)),
    )(x_p, w_in_p, bn0_scale, bn0_shift)

    # --- stage 2: all L propagation layers fused in one kernel -------------------------
    est_vmem = (2 * tm * tk * 2            # A tile (bf16, double buffered)
                + 2 * Np * Hp * 4          # resident acc output (f32, assume 2 buffers)
                + 2 * Np * Hp * 2          # h ping-pong scratch (bf16)
                + tm * Hp * 4              # matmul accumulator scratch
                + 4 * Hp * 4)              # BN affine blocks
    vmem_limit = int(min(64 * 2**20, max(2 * est_vmem, 32 * 2**20)))

    acc = pl.pallas_call(
        prop_fused_kernel,
        grid=(L, R, K),
        in_specs=[
            pl.BlockSpec(memory_space=pltpu.MemorySpace.SMEM),            # (L, 2) scalars
            pl.BlockSpec((1, tm, tk), lambda i, r, k: (i, r, k)),         # A, streamed bf16
            pl.BlockSpec(memory_space=pl.ANY),                            # h0 stays in HBM
            pl.BlockSpec((1, 1, Hp), lambda i, r, k: (i, 0, 0)),          # BN scale (layer i+1)
            pl.BlockSpec((1, 1, Hp), lambda i, r, k: (i, 0, 0)),          # BN shift (layer i+1)
        ],
        out_specs=pl.BlockSpec((Np, Hp), lambda i, r, k: (0, 0)),         # acc resident in VMEM
        out_shape=jax.ShapeDtypeStruct((Np, Hp), jnp.float32),
        scratch_shapes=[
            pltpu.VMEM((2, Np, Hp), jnp.bfloat16),   # h ping-pong across layers
            pltpu.VMEM((tm, Hp), jnp.float32),       # per-row-tile matmul accumulator
        ],
        compiler_params=pltpu.CompilerParams(
            dimension_semantics=("arbitrary", "arbitrary", "arbitrary"),
            vmem_limit_bytes=vmem_limit,
        ),
    )(scal, a_p, h0, bn_scale_prop, bn_shift_prop)

    # --- stage 3: logits = acc @ W_out + b_out, row-tiled, row axis parallel -----------
    out = pl.pallas_call(
        output_stage_kernel,
        grid=(R,),
        in_specs=[
            pl.BlockSpec((tm, Hp), lambda r: (r, 0)),
            pl.BlockSpec((Hp, Cp), lambda r: (0, 0)),
            pl.BlockSpec((1, Cp), lambda r: (0, 0)),
        ],
        out_specs=pl.BlockSpec((tm, Cp), lambda r: (r, 0)),
        out_shape=jax.ShapeDtypeStruct((Np, Cp), jnp.float32),
        compiler_params=pltpu.CompilerParams(dimension_semantics=("parallel",)),
    )(acc, w_out_p, b_out_p)

    return out[:N, :C]


# ---------------------------------------------------------------------------
# Pure-JAX reference (f32) for sanity checking
# ---------------------------------------------------------------------------
def _reference_forward(params, nodeblocks, x):
    scale = params["bn_gamma"] * jax.lax.rsqrt(params["bn_var"] + BN_EPS)
    shift = params["bn_beta"] - params["bn_mean"] * scale
    h = x @ params["w_in"] + params["b_in"]
    h = jnp.maximum(h * scale[0] + shift[0], 0.0)
    iw = jax.nn.sigmoid(params["identity_map_weight"])
    lw = jax.nn.softmax(params["layer_weight"], axis=0)
    acc = jnp.zeros_like(h)
    for i in range(nodeblocks.shape[0]):
        h_new = nodeblocks[i] @ h
        h_w = iw[i] * h + (1.0 - iw[i]) * h_new
        h_w = jnp.maximum(h_w * scale[i + 1] + shift[i + 1], 0.0)
        acc = acc + lw[i] * h_w
        h = h_new
    return acc @ params["w_out"] + params["b_out"]


# ---------------------------------------------------------------------------
# Deterministic parameter construction (synthetic; mirrors __init__ shapes)
# ---------------------------------------------------------------------------
def init_params(key, features_dim, hidden_dim, num_classes, num_layers, alpha=0.1):
    ks = jax.random.split(key, 6)
    w_in = jax.random.normal(ks[0], (features_dim, hidden_dim), jnp.float32) / np.sqrt(features_dim)
    b_in = jax.random.normal(ks[1], (1, hidden_dim), jnp.float32) * 0.01
    w_out = jax.random.normal(ks[2], (hidden_dim, num_classes), jnp.float32) / np.sqrt(hidden_dim)
    b_out = jax.random.normal(ks[3], (1, num_classes), jnp.float32) * 0.01

    # GPR-style layer-weight init, identical to the PyTorch __init__.
    temp = alpha * (1 - alpha) ** np.arange(num_layers + 1)
    temp[-1] = (1 - alpha) ** num_layers
    layer_weight = jnp.asarray(np.log(temp), jnp.float32)
    identity_map_weight = jnp.zeros((num_layers,), jnp.float32)

    bn_gamma = jnp.ones((num_layers + 1, 1, hidden_dim), jnp.float32)
    bn_beta = jnp.zeros((num_layers + 1, 1, hidden_dim), jnp.float32)
    bn_mean = jax.random.normal(ks[4], (num_layers + 1, 1, hidden_dim), jnp.float32) * 0.1
    bn_var = 1.0 + 0.1 * jax.random.uniform(ks[5], (num_layers + 1, 1, hidden_dim), jnp.float32)

    return dict(w_in=w_in, b_in=b_in, w_out=w_out, b_out=b_out,
                layer_weight=layer_weight, identity_map_weight=identity_map_weight,
                bn_gamma=bn_gamma, bn_beta=bn_beta, bn_mean=bn_mean, bn_var=bn_var)


if __name__ == "__main__":
    N, F, H, C, L = 512, 16, 32, 8, 3            # nodes, features, hidden, classes, layers
    key = jax.random.PRNGKey(0)
    k_x, k_a, k_p = jax.random.split(key, 3)

    x = jax.random.normal(k_x, (N, F), jnp.float32)
    # Dense, row-normalized non-negative adjacency blocks standing in for `nodeblocks`.
    a = jax.random.uniform(k_a, (L, N, N), jnp.float32)
    nodeblocks = a / jnp.sum(a, axis=-1, keepdims=True)

    params = init_params(k_p, F, H, C, L)

    out = decoupled_gcn_forward(params, nodeblocks, x)
    out = jax.block_until_ready(out)
    assert out.shape == (N, C) and out.dtype == jnp.float32

    # Loose tolerance: adjacency and the propagated hidden are carried in bf16.
    ref = _reference_forward(params, nodeblocks, x)
    assert float(jnp.max(jnp.abs(out - ref))) < 5e-2

    print("KERNEL_OK")
</pallas_src>

<mosaic_0001>
module attributes {stable_mosaic.version = 11 : i64} {
  func.func @input_stage_kernel(%arg0: i32, %arg1: memref<256x128xf32, #tpu.memory_space<vmem>>, %arg2: memref<128x128xf32, #tpu.memory_space<vmem>>, %arg3: memref<1x128xf32, #tpu.memory_space<vmem>>, %arg4: memref<1x128xf32, #tpu.memory_space<vmem>>, %arg5: memref<256x128xbf16, #tpu.memory_space<vmem>>) attributes {dimension_semantics = [#tpu.dimension_semantics<parallel>], iteration_bounds = array<i64: 2>, scalar_prefetch = 0 : i64, scratch_operands = 0 : i64, tpu.core_type = #tpu.core_type<tc>, window_params = [{transform_indices = @transform_0, window_bounds = array<i64: 256, 128>}, {pipeline_mode = #tpu.pipeline_mode<synchronous>, transform_indices = @transform_1, window_bounds = array<i64: 128, 128>}, {pipeline_mode = #tpu.pipeline_mode<synchronous>, transform_indices = @transform_2, window_bounds = array<i64: 1, 128>}, {pipeline_mode = #tpu.pipeline_mode<synchronous>, transform_indices = @transform_3, window_bounds = array<i64: 1, 128>}, {transform_indices = @transform_4, window_bounds = array<i64: 256, 128>}]} {
    %c0 = arith.constant 0 : index
    %c0_0 = arith.constant 0 : index
    %0 = vector.load %arg1[%c0, %c0_0] : memref<256x128xf32, #tpu.memory_space<vmem>>, vector<256x128xf32>
    %c0_1 = arith.constant 0 : index
    %c0_2 = arith.constant 0 : index
    %1 = vector.load %arg2[%c0_1, %c0_2] : memref<128x128xf32, #tpu.memory_space<vmem>>, vector<128x128xf32>
    %cst = arith.constant dense<0.000000e+00> : vector<256x128xf32>
    %2 = tpu.matmul %0, %1, %cst {dimension_numbers = #tpu.dot_dimension_numbers<[1], [0], [0], [1], [0, 0, 1, 1], [], []>} : vector<256x128xf32>, vector<128x128xf32>, vector<256x128xf32> -> vector<256x128xf32>
    %c0_3 = arith.constant 0 : index
    %c0_4 = arith.constant 0 : index
    %3 = vector.load %arg3[%c0_3, %c0_4] : memref<1x128xf32, #tpu.memory_space<vmem>>, vector<1x128xf32>
    %4 = vector.broadcast %3 : vector<1x128xf32> to vector<256x128xf32>
    %5 = arith.mulf %2, %4 : vector<256x128xf32>
    %c0_5 = arith.constant 0 : index
    %c0_6 = arith.constant 0 : index
    %6 = vector.load %arg4[%c0_5, %c0_6] : memref<1x128xf32, #tpu.memory_space<vmem>>, vector<1x128xf32>
    %7 = vector.broadcast %6 : vector<1x128xf32> to vector<256x128xf32>
    %8 = arith.addf %5, %7 : vector<256x128xf32>
    %cst_7 = arith.constant 0.000000e+00 : f32
    %9 = vector.broadcast %cst_7 : f32 to vector<256x128xf32>
    %10 = arith.maximumf %8, %9 : vector<256x128xf32>
    %11 = arith.truncf %10 : vector<256x128xf32> to vector<256x128xbf16>
    %c0_8 = arith.constant 0 : index
    %c0_9 = arith.constant 0 : index
    %12 = vector.load %arg5[%c0_8, %c0_9] : memref<256x128xbf16, #tpu.memory_space<vmem>>, vector<256x128xbf16>
    tpu.vector_store %arg5[%c0_8, %c0_9], %11 {strides = array<i32>} : memref<256x128xbf16, #tpu.memory_space<vmem>>, vector<256x128xbf16>,
    return
  }
  func.func @transform_0(%arg0: i32) -> (i32, i32) {
    %c0_i32 = arith.constant 0 : i32
    %c0_i32_0 = arith.constant 0 : i32
    return %arg0, %c0_i32 : i32, i32
  }
  func.func @transform_1(%arg0: i32) -> (i32, i32) {
    %c0_i32 = arith.constant 0 : i32
    %c0_i32_0 = arith.constant 0 : i32
    %c0_i32_1 = arith.constant 0 : i32
    return %c0_i32, %c0_i32_0 : i32, i32
  }
  func.func @transform_2(%arg0: i32) -> (i32, i32) {
    %c0_i32 = arith.constant 0 : i32
    %c0_i32_0 = arith.constant 0 : i32
    %c0_i32_1 = arith.constant 0 : i32
    return %c0_i32, %c0_i32_0 : i32, i32
  }
  func.func @transform_3(%arg0: i32) -> (i32, i32) {
    %c0_i32 = arith.constant 0 : i32
    %c0_i32_0 = arith.constant 0 : i32
    %c0_i32_1 = arith.constant 0 : i32
    return %c0_i32, %c0_i32_0 : i32, i32
  }
  func.func @transform_4(%arg0: i32) -> (i32, i32) {
    %c0_i32 = arith.constant 0 : i32
    %c0_i32_0 = arith.constant 0 : i32
    return %arg0, %c0_i32 : i32, i32
  }
}

</mosaic_0001>

<llo_original>
// kernel: tpu_custom_call.1
$region0: #{tpu_custom_call.1}
  #allocation0 [shape = 'u32[]', space=smem, size = 0x4, offset = 0x4, fixed_abs, tag = 'smem constant byte address 0x4 - core index']
  #allocation1 [shape = 'u32[144,128]{1,0:T(1,128)}', space=vmem, size = 0x12000, scoped, tag = 'internal scratch']
  %s0 = inlined_call_operand.hbm [shape: f32[512,128], index: 0, kind: input, shape index: {}]
  %s1 = inlined_call_operand.hbm [shape: f32[128,128], index: 1, kind: input, shape index: {}]
  %s2 = inlined_call_operand.vmem [shape: f32[1,128], index: 2, kind: input, shape index: {}]
  %s3 = inlined_call_operand.vmem [shape: f32[1,128], index: 3, kind: input, shape index: {}]
  %s4 = inlined_call_operand.hbm [shape: bf16[512,128], index: 4, kind: output, shape index: {}]
  %s5 = sld [smem:[#allocation0]]
  $region57: #{tpu_custom_call.1} parent=0
    _
  %s7 = ssub.s32 1, %s5
  %s8 = scalar_select 0, %s7, %s5
  $region1: #{tpu_custom_call.1} parent=0
    #allocation2 [shape = 'u8[262144]{0}', space=vmem, size = 0x40000, scoped, tag = 'input window, operand 0']
    #allocation3 [shape = 's32[2]{0}', space=sflag, size = 0x8, scoped, tag = 'scoped memory for tpu_custom_call.1']
    #allocation4 [shape = 's32[2]{0}', space=sflag, size = 0x8, scoped, tag = 'scoped memory for tpu_custom_call.1']
    #allocation5 [shape = 'u8[65536]{0}', space=vmem, size = 0x10000, scoped, tag = 'input window, operand 1, single buffered']
    #allocation6 [shape = 's32[1]{0}', space=sflag, size = 0x4, scoped, tag = 'scoped memory for tpu_custom_call.1']
    #allocation7 [shape = 'u8[131072]{0}', space=vmem, size = 0x20000, scoped, tag = 'output window, operand 0']
    %9 = vsyncpa [#allocation3], 0
    %s10 = scalar_lea.sflag [#allocation3], 1
    %11 = vsyncpa %s10, 0
    %12 = vsyncpa [#allocation6], 0
    %13 = vsyncpa [#allocation4], 0
    %s14 = scalar_lea.sflag [#allocation4], 1
    %15 = vsyncpa %s14, 0
    loop: start=0, step=1, limit=4
    $region2: #{tpu_custom_call.1} parent=1 // loop_pre_header
      _
    $region3: #{tpu_custom_call.1} parent=1 // loop_header
      %s17 = sphi 0, %s21
      %p18 = scmp.ge.s32.totalorder %s17, 4
      %s27 = sphi 0, %s29
      %s30 = sphi 0, %s27
      %s31 = sphi 0, %s30
      %s47 = sphi 0, %s31
      %s51 = sphi 0, %s51
      %s53 = sphi 0, %s51
      %s54 = sphi 0, %s53
      %s68 = sphi 0, %s54
      %s72 = sphi 0, %s72
      %s74 = sphi 0, %s72
      %s75 = sphi 0, %s74
      %s89 = sphi 0, %s75
      %s93 = sphi 0, %s93
      %s95 = sphi 0, %s93
      %s96 = sphi 0, %s95
      %s110 = sphi 0, %s96
      %s116 = sphi 0, %s118
      %s119 = sphi 0, %s116
      %s120 = sphi 0, %s119
      %s136 = sphi 0, %s120
    $region4: #{tpu_custom_call.1} parent=1 // loop_header_branch
      %20 = sbr.rel (%p18) target = $region8
    $region5: #{tpu_custom_call.1} parent=1 // loop_body
      %s22 = ssub.s32 %s17, 1
      %s23 = ssub.s32 %s17, 2
      %s24 = sadd.s32 %s17, 1
      %s25 = ssub.s32 %s17, %s24
      %p26 = scmp.eq.s32.totalorder %s25, 0
      %s28 = sadd.s32 %s27, 1
      %s29 = scalar_select %p26, %s27, %s28
      %p32 = pneg %p26
      %p33 = scmp.eq.s32.totalorder %s17, 1
      %p34 = por %p32, %p33
      %p35 = scmp.ne.s32.totalorder %s27, %s30
      %p36 = scmp.eq.s32.totalorder %s17, 0
      %p37 = por %p35, %p36
      %p38 = scmp.ne.s32.totalorder %s27, %s30
      %p39 = scmp.eq.s32.totalorder %s22, 1
      %p40 = por %p38, %p39
      %p41 = scmp.ne.s32.totalorder %s30, %s31
      %p42 = scmp.eq.s32.totalorder %s22, 0
      %p43 = por %p41, %p42
      %p44 = scmp.ne.s32.totalorder %s30, %s31
      %p45 = scmp.eq.s32.totalorder %s23, 1
      %p46 = por %p44, %p45
      %p48 = scmp.ne.s32.totalorder %s31, %s47
      %p49 = scmp.eq.s32.totalorder %s23, 0
      %p50 = por %p48, %p49
      %s52 = sadd.s32 %s51, 1
      %p55 = scmp.eq.s32.totalorder %s17, 1
      %p56 = scmp.ne.s32.totalorder %s51, %s53
      %p57 = scmp.eq.s32.totalorder %s17, 0
      %p58 = por %p56, %p57
      %p59 = scmp.ne.s32.totalorder %s51, %s53
      %p60 = scmp.eq.s32.totalorder %s22, 1
      %p61 = por %p59, %p60
      %p62 = scmp.ne.s32.totalorder %s53, %s54
      %p63 = scmp.eq.s32.totalorder %s22, 0
      %p64 = por %p62, %p63
      %p65 = scmp.ne.s32.totalorder %s53, %s54
      %p66 = scmp.eq.s32.totalorder %s23, 1
      %p67 = por %p65, %p66
      %p69 = scmp.ne.s32.totalorder %s54, %s68
      %p70 = scmp.eq.s32.totalorder %s23, 0
      %p71 = por %p69, %p70
      %s73 = sadd.s32 %s72, 1
      %p76 = scmp.eq.s32.totalorder %s17, 1
      %p77 = scmp.ne.s32.totalorder %s72, %s74
      %p78 = scmp.eq.s32.totalorder %s17, 0
      %p79 = por %p77, %p78
      %p80 = scmp.ne.s32.totalorder %s72, %s74
      %p81 = scmp.eq.s32.totalorder %s22, 1
      %p82 = por %p80, %p81
      %p83 = scmp.ne.s32.totalorder %s74, %s75
      %p84 = scmp.eq.s32.totalorder %s22, 0
      %p85 = por %p83, %p84
      %p86 = scmp.ne.s32.totalorder %s74, %s75
      %p87 = scmp.eq.s32.totalorder %s23, 1
      %p88 = por %p86, %p87
      %p90 = scmp.ne.s32.totalorder %s75, %s89
      %p91 = scmp.eq.s32.totalorder %s23, 0
      %p92 = por %p90, %p91
      %s94 = sadd.s32 %s93, 1
      %p97 = scmp.eq.s32.totalorder %s17, 1
      %p98 = scmp.ne.s32.totalorder %s93, %s95
      %p99 = scmp.eq.s32.totalorder %s17, 0
      %p100 = por %p98, %p99
      %p101 = scmp.ne.s32.totalorder %s93, %s95
      %p102 = scmp.eq.s32.totalorder %s22, 1
      %p103 = por %p101, %p102
      %p104 = scmp.ne.s32.totalorder %s95, %s96
      %p105 = scmp.eq.s32.totalorder %s22, 0
      %p106 = por %p104, %p105
      %p107 = scmp.ne.s32.totalorder %s95, %s96
      %p108 = scmp.eq.s32.totalorder %s23, 1
      %p109 = por %p107, %p108
      %p111 = scmp.ne.s32.totalorder %s96, %s110
      %p112 = scmp.eq.s32.totalorder %s23, 0
      %p113 = por %p111, %p112
      %s114 = ssub.s32 %s17, %s24
      %p115 = scmp.eq.s32.totalorder %s114, 0
      %s117 = sadd.s32 %s116, 1
      %s118 = scalar_select %p115, %s116, %s117
      %p121 = pneg %p115
      %p122 = scmp.eq.s32.totalorder %s17, 1
      %p123 = por %p121, %p122
      %p124 = scmp.ne.s32.totalorder %s116, %s119
      %p125 = scmp.eq.s32.totalorder %s17, 0
      %p126 = por %p124, %p125
      %p127 = scmp.ne.s32.totalorder %s116, %s119
      %p128 = scmp.eq.s32.totalorder %s22, 1
      %p129 = por %p127, %p128
      %p130 = scmp.ne.s32.totalorder %s119, %s120
      %p131 = scmp.eq.s32.totalorder %s22, 0
      %p132 = por %p130, %p131
      %p133 = scmp.ne.s32.totalorder %s119, %s120
      %p134 = scmp.eq.s32.totalorder %s23, 1
      %p135 = por %p133, %p134
      %p137 = scmp.ne.s32.totalorder %s120, %s136
      %p138 = scmp.eq.s32.totalorder %s23, 0
      %p139 = por %p137, %p138
      %p140 = scmp.le.s32.totalorder 1, %s17
      %p141 = scmp.lt.s32.totalorder %s17, 3
      %p142 = pnand %p140, %p141
      %p143 = pneg %p142
      // Predicated region
      $region9: #{tpu_custom_call.1} parent=5 // pred_check
        _
      $region10: #{tpu_custom_call.1} parent=5 // pred_check_branch
        %145 = sbr.rel (%p142) target = $region12
      $region11: #{tpu_custom_call.1} parent=5 // pred_region
        %s146 = ssub.s32 %s17, 1
        // Predicated region
        $region13: #{tpu_custom_call.1} parent=11 // pred_check
          %p147 = pneg %p64
        $region14: #{tpu_custom_call.1} parent=11 // pred_check_branch
          %149 = sbr.rel (%p147) target = $region16
        $region15: #{tpu_custom_call.1} parent=11 // pred_region
          %s151 = ssub.s32 2048, 2048
          %152 = vsyncadd [#allocation6], %s151
          %s153 = sshll.u32 [#allocation5], 4
          %s154 = int_to_ptr.vmem [resolvable:$true] %s153
          %159 = dma.hbm_to_vmem [thread:$0]  %s1, 2048, %s154, [#allocation6], 128, 128, 8
        $region16: #{tpu_custom_call.1} parent=11 // pred_fallthru
          _
        // Predicated region
        $region17: #{tpu_custom_call.1} parent=11 // pred_check
          %p160 = pneg %p85
        $region18: #{tpu_custom_call.1} parent=11 // pred_check_branch
          %162 = sbr.rel (%p160) target = $region20
        $region19: #{tpu_custom_call.1} parent=11 // pred_region
          _
        $region20: #{tpu_custom_call.1} parent=11 // pred_fallthru
          _
        // Predicated region
        $region21: #{tpu_custom_call.1} parent=11 // pred_check
          %p163 = pneg %p106
        $region22: #{tpu_custom_call.1} parent=11 // pred_check_branch
          %165 = sbr.rel (%p163) target = $region24
        $region23: #{tpu_custom_call.1} parent=11 // pred_region
          _
        $region24: #{tpu_custom_call.1} parent=11 // pred_fallthru
          _
      $region12: #{tpu_custom_call.1} parent=5 // pred_fallthru
        _
      %p166 = scmp.lt.s32.totalorder %s17, 2
      // Predicated region
      $region25: #{tpu_custom_call.1} parent=5 // pred_check
        %p167 = pneg %p166
      $region26: #{tpu_custom_call.1} parent=5 // pred_check_branch
        %169 = sbr.rel (%p167) target = $region28
      $region27: #{tpu_custom_call.1} parent=5 // pred_region
        // Predicated region
        $region29: #{tpu_custom_call.1} parent=27 // pred_check
          %p170 = pneg %p37
        $region30: #{tpu_custom_call.1} parent=27 // pred_check_branch
          %172 = sbr.rel (%p170) target = $region32
        $region31: #{tpu_custom_call.1} parent=27 // pred_region
          %s173 = sand.u32 %s27, 1
          %s174 = scalar_lea.sflag [#allocation3], %s173
          %s175 = sand.u32 %s27, 1
          %s176 = smul.addr %s175, 256
          %s177 = scalar_lea.vmem [#allocation2], %s176
          %s178 = smul.u32 32, %s17
          %s180 = ssub.s32 4096, 4096
          %181 = vsyncadd %s174, %s180
          %s182 = smul.addr %s178, 128
          %s183 = scalar_lea.hbm %s0, %s182
          %s184 = sshll.u32 %s177, 4
          %s185 = int_to_ptr.vmem [resolvable:$true] %s184
          %190 = dma.hbm_to_vmem [thread:$0]  %s183, 4096, %s185, %s174, 128, 128, 8
        $region32: #{tpu_custom_call.1} parent=27 // pred_fallthru
          _
      $region28: #{tpu_custom_call.1} parent=5 // pred_fallthru
        _
      %p191 = scmp.le.s32.totalorder 1, %s17
      %p192 = scmp.lt.s32.totalorder %s17, 3
      %p193 = pnand %p191, %p192
      %p194 = pneg %p193
      // Predicated region
      $region33: #{tpu_custom_call.1} parent=5 // pred_check
        _
      $region34: #{tpu_custom_call.1} parent=5 // pred_check_branch
        %196 = sbr.rel (%p193) target = $region36
      $region35: #{tpu_custom_call.1} parent=5 // pred_region
        %s197 = ssub.s32 %s17, 1
        %s198 = sand.u32 %s30, 1
        %s199 = scalar_lea.sflag [#allocation3], %s198
        %s200 = sand.u32 %s30, 1
        %s201 = smul.addr %s200, 256
        %s202 = scalar_lea.vmem [#allocation2], %s201
        // Predicated region
        $region37: #{tpu_custom_call.1} parent=35 // pred_check
          %p203 = pneg %p43
        $region38: #{tpu_custom_call.1} parent=35 // pred_check_branch
          %205 = sbr.rel (%p203) target = $region40
        $region39: #{tpu_custom_call.1} parent=35 // pred_region
          %206 = dma.done %s199, 4096
        $region40: #{tpu_custom_call.1} parent=35 // pred_fallthru
          _
        // Predicated region
        $region41: #{tpu_custom_call.1} parent=35 // pred_check
          %p207 = pneg %p64
        $region42: #{tpu_custom_call.1} parent=35 // pred_check_branch
          %209 = sbr.rel (%p207) target = $region44
        $region43: #{tpu_custom_call.1} parent=35 // pred_region
          %210 = dma.done [#allocation6], 2048
        $region44: #{tpu_custom_call.1} parent=35 // pred_fallthru
          _
        %s211 = sand.u32 %s30, 1
        %s212 = scalar_lea.sflag [#allocation3], %s211
        %s213 = sand.u32 %s30, 1
        %s214 = smul.addr %s213, 256
        %s215 = scalar_lea.vmem [#allocation2], %s214
        %p216 = pneg %p43
        %p217 = pneg %p40
        %p218 = pneg %p64
        %p219 = pneg %p61
        %p220 = pneg %p85
        %p221 = pneg %p82
        %p222 = pneg %p106
        %p223 = pneg %p103
        %p224 = pneg %p132
        %p225 = pneg %p129
        %s226 = sand.u32 %s119, 1
        %s227 = scalar_lea.sflag [#allocation4], %s226
        %s228 = sand.u32 %s119, 1
        %s229 = smul.addr %s228, 128
        %s230 = scalar_lea.vmem [#allocation7], %s229
        %s231 = smul.u32 32, %s22
        %s232 = smul.u32 32, %s22
        %v233 = vld [vmem:[%s202] sm:$0xff]
        %v234 = vld [vmem:[%s202 + $0x8] sm:$0xff]
        %v235 = vld [vmem:[%s202 + $0x10] sm:$0xff]
        %v236 = vld [vmem:[%s202 + $0x18] sm:$0xff]
        %v237 = vld [vmem:[%s202 + $0x20] sm:$0xff]
        %v238 = vld [vmem:[%s202 + $0x28] sm:$0xff]
        %v239 = vld [vmem:[%s202 + $0x30] sm:$0xff]
        %v240 = vld [vmem:[%s202 + $0x38] sm:$0xff]
        %v241 = vld [vmem:[%s202 + $0x40] sm:$0xff]
        %v242 = vld [vmem:[%s202 + $0x48] sm:$0xff]
        %v243 = vld [vmem:[%s202 + $0x50] sm:$0xff]
        %v244 = vld [vmem:[%s202 + $0x58] sm:$0xff]
        %v245 = vld [vmem:[%s202 + $0x60] sm:$0xff]
        %v246 = vld [vmem:[%s202 + $0x68] sm:$0xff]
        %v247 = vld [vmem:[%s202 + $0x70] sm:$0xff]
        %v248 = vld [vmem:[%s202 + $0x78] sm:$0xff]
        %v249 = vld [vmem:[%s202 + $0x80] sm:$0xff]
        %v250 = vld [vmem:[%s202 + $0x88] sm:$0xff]
        %v251 = vld [vmem:[%s202 + $0x90] sm:$0xff]
        %v252 = vld [vmem:[%s202 + $0x98] sm:$0xff]
        %v253 = vld [vmem:[%s202 + $0xa0] sm:$0xff]
        %v254 = vld [vmem:[%s202 + $0xa8] sm:$0xff]
        %v255 = vld [vmem:[%s202 + $0xb0] sm:$0xff]
        %v256 = vld [vmem:[%s202 + $0xb8] sm:$0xff]
        %v257 = vld [vmem:[%s202 + $0xc0] sm:$0xff]
        %v258 = vld [vmem:[%s202 + $0xc8] sm:$0xff]
        %v259 = vld [vmem:[%s202 + $0xd0] sm:$0xff]
        %v260 = vld [vmem:[%s202 + $0xd8] sm:$0xff]
        %v261 = vld [vmem:[%s202 + $0xe0] sm:$0xff]
        %v262 = vld [vmem:[%s202 + $0xe8] sm:$0xff]
        %v263 = vld [vmem:[%s202 + $0xf0] sm:$0xff]
        %v264 = vld [vmem:[%s202 + $0xf8] sm:$0xff]
        %v265 = vld [vmem:[#allocation5] sm:$0xff]
        %v266 = vld [vmem:[#allocation5 + $0x8] sm:$0xff]
        %v267 = vld [vmem:[#allocation5 + $0x10] sm:$0xff]
        %v268 = vld [vmem:[#allocation5 + $0x18] sm:$0xff]
        %v269 = vld [vmem:[#allocation5 + $0x20] sm:$0xff]
        %v270 = vld [vmem:[#allocation5 + $0x28] sm:$0xff]
        %v271 = vld [vmem:[#allocation5 + $0x30] sm:$0xff]
        %v272 = vld [vmem:[#allocation5 + $0x38] sm:$0xff]
        %v273 = vld [vmem:[#allocation5 + $0x40] sm:$0xff]
        %v274 = vld [vmem:[#allocation5 + $0x48] sm:$0xff]
        %v275 = vld [vmem:[#allocation5 + $0x50] sm:$0xff]
        %v276 = vld [vmem:[#allocation5 + $0x58] sm:$0xff]
        %v277 = vld [vmem:[#allocation5 + $0x60] sm:$0xff]
        %v278 = vld [vmem:[#allocation5 + $0x68] sm:$0xff]
        %v279 = vld [vmem:[#allocation5 + $0x70] sm:$0xff]
        %v280 = vld [vmem:[#allocation5 + $0x78] sm:$0xff]
        %281 = vmatprep.subr.mxu0 0.0
        %282 = vmatpush1.msra.mxu0 %v265
        %283 = vmatprep.subr.mxu0 0.0
        %284 = vmatpush1.msra.mxu0 %v266
        %285 = vmatprep.subr.mxu0 0.0
        %286 = vmatpush1.msra.mxu0 %v267
        %287 = vmatprep.subr.mxu0 0.0
        %288 = vmatpush1.msra.mxu0 %v268
        %289 = vmatprep.subr.mxu0 0.0
        %290 = vmatpush1.msra.mxu0 %v269
        %291 = vmatprep.subr.mxu0 0.0
        %292 = vmatpush1.msra.mxu0 %v270
        %293 = vmatprep.subr.mxu0 0.0
        %294 = vmatpush1.msra.mxu0 %v271
        %295 = vmatprep.subr.mxu0 0.0
        %296 = vmatpush1.msra.mxu0 %v272
        %297 = vmatprep.subr.mxu0 0.0
        %298 = vmatpush1.msra.mxu0 %v273
        %299 = vmatprep.subr.mxu0 0.0
        %300 = vmatpush1.msra.mxu0 %v274
        %301 = vmatprep.subr.mxu0 0.0
        %302 = vmatpush1.msra.mxu0 %v275
        %303 = vmatprep.subr.mxu0 0.0
        %304 = vmatpush1.msra.mxu0 %v276
        %305 = vmatprep.subr.mxu0 0.0
        %306 = vmatpush1.msra.mxu0 %v277
        %307 = vmatprep.subr.mxu0 0.0
        %308 = vmatpush1.msra.mxu0 %v278
        %309 = vmatprep.subr.mxu0 0.0
        %310 = vmatpush1.msra.mxu0 %v279
        %311 = vmatprep.subr.mxu0 0.0
        %312 = vmatpush1.msra.mxu0 %v280
        %313 = vmatprep.subr.mxu0 0.0
        %314 = vmatpush1.msra.mxu0 0.0
        %315 = vmatprep.subr.mxu0 0.0
        %316 = vmatpush1.msra.mxu0 0.0
        %317 = vmatprep.subr.mxu0 0.0
        %318 = vmatpush1.msra.mxu0 0.0
        %319 = vmatprep.subr.mxu0 0.0
        %320 = vmatpush1.msra.mxu0 0.0
        %321 = vmatprep.subr.mxu0 0.0
        %322 = vmatpush1.msra.mxu0 0.0
        %323 = vmatprep.subr.mxu0 0.0
        %324 = vmatpush1.msra.mxu0 0.0
        %325 = vmatprep.subr.mxu0 0.0
        %326 = vmatpush1.msra.mxu0 0.0
        %327 = vmatprep.subr.mxu0 0.0
        %328 = vmatpush1.msra.mxu0 0.0
        %329 = vmatprep.subr.mxu0 0.0
        %330 = vmatpush1.msra.mxu0 0.0
        %331 = vmatprep.subr.mxu0 0.0
        %332 = vmatpush1.msra.mxu0 0.0
        %333 = vmatprep.subr.mxu0 0.0
        %334 = vmatpush1.msra.mxu0 0.0
        %335 = vmatprep.subr.mxu0 0.0
        %336 = vmatpush1.msra.mxu0 0.0
        %337 = vmatprep.subr.mxu0 0.0
        %338 = vmatpush1.msra.mxu0 0.0
        %339 = vmatprep.subr.mxu0 0.0
        %340 = vmatpush1.msra.mxu0 0.0
        %341 = vmatprep.subr.mxu0 0.0
        %342 = vmatpush1.msra.mxu0 0.0
        %343 = vmatprep.subr.mxu0 0.0
        %344 = vmatpush1.msra.mxu0 0.0
        %345 = vmatprep.mubr.f32.mxu0 0.0
        %346 = vmatmul.mubr.f32.gmra.mrb[0].mxu0 %v233
        %v347 = vpop.f32.mrb[0].mxu0
        %v348 = vadd.f32 0.0, %v347
        %v349 = vpop.f32.mrb[0].mxu0
        %350 = vmatprep.mubr.f32.mxu0 0.0
        %351 = vmatmul.mubr.f32.gmra.mrb[0].mxu0 %v234
        %v352 = vpop.f32.mrb[0].mxu0
        %v353 = vadd.f32 0.0, %v352
        %v354 = vpop.f32.mrb[0].mxu0
        %355 = vmatprep.mubr.f32.mxu0 0.0
        %356 = vmatmul.mubr.f32.gmra.mrb[0].mxu0 %v235
        %v357 = vpop.f32.mrb[0].mxu0
        %v358 = vadd.f32 0.0, %v357
        %v359 = vpop.f32.mrb[0].mxu0
        %360 = vmatprep.mubr.f32.mxu0 0.0
        %361 = vmatmul.mubr.f32.gmra.mrb[0].mxu0 %v236
        %v362 = vpop.f32.mrb[0].mxu0
        %v363 = vadd.f32 0.0, %v362
        %v364 = vpop.f32.mrb[0].mxu0
        %365 = vmatprep.mubr.f32.mxu0 0.0
        %366 = vmatmul.mubr.f32.gmra.mrb[0].mxu0 %v237
        %v367 = vpop.f32.mrb[0].mxu0
        %v368 = vadd.f32 0.0, %v367
        %v369 = vpop.f32.mrb[0].mxu0
        %370 = vmatprep.mubr.f32.mxu0 0.0
        %371 = vmatmul.mubr.f32.gmra.mrb[0].mxu0 %v238
        %v372 = vpop.f32.mrb[0].mxu0
        %v373 = vadd.f32 0.0, %v372
        %v374 = vpop.f32.mrb[0].mxu0
        %375 = vmatprep.mubr.f32.mxu0 0.0
        %376 = vmatmul.mubr.f32.gmra.mrb[0].mxu0 %v239
        %v377 = vpop.f32.mrb[0].mxu0
        %v378 = vadd.f32 0.0, %v377
        %v379 = vpop.f32.mrb[0].mxu0
        %380 = vmatprep.mubr.f32.mxu0 0.0
        %381 = vmatmul.mubr.f32.gmra.mrb[0].mxu0 %v240
        %v382 = vpop.f32.mrb[0].mxu0
        %v383 = vadd.f32 0.0, %v382
        %v384 = vpop.f32.mrb[0].mxu0
        %385 = vmatprep.mubr.f32.mxu0 0.0
        %386 = vmatmul.mubr.f32.gmra.mrb[0].mxu0 %v241
        %v387 = vpop.f32.mrb[0].mxu0
        %v388 = vadd.f32 0.0, %v387
        %v389 = vpop.f32.mrb[0].mxu0
        %390 = vmatprep.mubr.f32.mxu0 0.0
        %391 = vmatmul.mubr.f32.gmra.mrb[0].mxu0 %v242
        %v392 = vpop.f32.mrb[0].mxu0
        %v393 = vadd.f32 0.0, %v392
        %v394 = vpop.f32.mrb[0].mxu0
        %395 = vmatprep.mubr.f32.mxu0 0.0
        %396 = vmatmul.mubr.f32.gmra.mrb[0].mxu0 %v243
        %v397 = vpop.f32.mrb[0].mxu0
        %v398 = vadd.f32 0.0, %v397
        %v399 = vpop.f32.mrb[0].mxu0
        %400 = vmatprep.mubr.f32.mxu0 0.0
        %401 = vmatmul.mubr.f32.gmra.mrb[0].mxu0 %v244
        %v402 = vpop.f32.mrb[0].mxu0
        %v403 = vadd.f32 0.0, %v402
        %v404 = vpop.f32.mrb[0].mxu0
        %405 = vmatprep.mubr.f32.mxu0 0.0
        %406 = vmatmul.mubr.f32.gmra.mrb[0].mxu0 %v245
        %v407 = vpop.f32.mrb[0].mxu0
        %v408 = vadd.f32 0.0, %v407
        %v409 = vpop.f32.mrb[0].mxu0
        %410 = vmatprep.mubr.f32.mxu0 0.0
        %411 = vmatmul.mubr.f32.gmra.mrb[0].mxu0 %v246
        %v412 = vpop.f32.mrb[0].mxu0
        %v413 = vadd.f32 0.0, %v412
        %v414 = vpop.f32.mrb[0].mxu0
        %415 = vmatprep.mubr.f32.mxu0 0.0
        %416 = vmatmul.mubr.f32.gmra.mrb[0].mxu0 %v247
        %v417 = vpop.f32.mrb[0].mxu0
        %v418 = vadd.f32 0.0, %v417
        %v419 = vpop.f32.mrb[0].mxu0
        %420 = vmatprep.mubr.f32.mxu0 0.0
        %421 = vmatmul.mubr.f32.gmra.mrb[0].mxu0 %v248
        %v422 = vpop.f32.mrb[0].mxu0
        %v423 = vadd.f32 0.0, %v422
        %v424 = vpop.f32.mrb[0].mxu0
        %425 = vmatprep.mubr.f32.mxu0 0.0
        %426 = vmatmul.mubr.f32.gmra.mrb[0].mxu0 %v249
        %v427 = vpop.f32.mrb[0].mxu0
        %v428 = vadd.f32 0.0, %v427
        %v429 = vpop.f32.mrb[0].mxu0
        %430 = vmatprep.mubr.f32.mxu0 0.0
        %431 = vmatmul.mubr.f32.gmra.mrb[0].mxu0 %v250
        %v432 = vpop.f32.mrb[0].mxu0
        %v433 = vadd.f32 0.0, %v432
        %v434 = vpop.f32.mrb[0].mxu0
        %435 = vmatprep.mubr.f32.mxu0 0.0
        %436 = vmatmul.mubr.f32.gmra.mrb[0].mxu0 %v251
        %v437 = vpop.f32.mrb[0].mxu0
        %v438 = vadd.f32 0.0, %v437
        %v439 = vpop.f32.mrb[0].mxu0
        %440 = vmatprep.mubr.f32.mxu0 0.0
        %441 = vmatmul.mubr.f32.gmra.mrb[0].mxu0 %v252
        %v442 = vpop.f32.mrb[0].mxu0
        %v443 = vadd.f32 0.0, %v442
        %v444 = vpop.f32.mrb[0].mxu0
        %445 = vmatprep.mubr.f32.mxu0 0.0
        %446 = vmatmul.mubr.f32.gmra.mrb[0].mxu0 %v253
        %v447 = vpop.f32.mrb[0].mxu0
        %v448 = vadd.f32 0.0, %v447
        %v449 = vpop.f32.mrb[0].mxu0
        %450 = vmatprep.mubr.f32.mxu0 0.0
        %451 = vmatmul.mubr.f32.gmra.mrb[0].mxu0 %v254
        %v452 = vpop.f32.mrb[0].mxu0
        %v453 = vadd.f32 0.0, %v452
        %v454 = vpop.f32.mrb[0].mxu0
        %455 = vmatprep.mubr.f32.mxu0 0.0
        %456 = vmatmul.mubr.f32.gmra.mrb[0].mxu0 %v255
        %v457 = vpop.f32.mrb[0].mxu0
        %v458 = vadd.f32 0.0, %v457
        %v459 = vpop.f32.mrb[0].mxu0
        %460 = vmatprep.mubr.f32.mxu0 0.0
        %461 = vmatmul.mubr.f32.gmra.mrb[0].mxu0 %v256
        %v462 = vpop.f32.mrb[0].mxu0
        %v463 = vadd.f32 0.0, %v462
        %v464 = vpop.f32.mrb[0].mxu0
        %465 = vmatprep.mubr.f32.mxu0 0.0
        %466 = vmatmul.mubr.f32.gmra.mrb[0].mxu0 %v257
        %v467 = vpop.f32.mrb[0].mxu0
        %v468 = vadd.f32 0.0, %v467
        %v469 = vpop.f32.mrb[0].mxu0
        %470 = vmatprep.mubr.f32.mxu0 0.0
        %471 = vmatmul.mubr.f32.gmra.mrb[0].mxu0 %v258
        %v472 = vpop.f32.mrb[0].mxu0
        %v473 = vadd.f32 0.0, %v472
        %v474 = vpop.f32.mrb[0].mxu0
        %475 = vmatprep.mubr.f32.mxu0 0.0
        %476 = vmatmul.mubr.f32.gmra.mrb[0].mxu0 %v259
        %v477 = vpop.f32.mrb[0].mxu0
        %v478 = vadd.f32 0.0, %v477
        %v479 = vpop.f32.mrb[0].mxu0
        %480 = vmatprep.mubr.f32.mxu0 0.0
        %481 = vmatmul.mubr.f32.gmra.mrb[0].mxu0 %v260
        %v482 = vpop.f32.mrb[0].mxu0
        %v483 = vadd.f32 0.0, %v482
        %v484 = vpop.f32.mrb[0].mxu0
        %485 = vmatprep.mubr.f32.mxu0 0.0
        %486 = vmatmul.mubr.f32.gmra.mrb[0].mxu0 %v261
        %v487 = vpop.f32.mrb[0].mxu0
        %v488 = vadd.f32 0.0, %v487
        %v489 = vpop.f32.mrb[0].mxu0
        %490 = vmatprep.mubr.f32.mxu0 0.0
        %491 = vmatmul.mubr.f32.gmra.mrb[0].mxu0 %v262
        %v492 = vpop.f32.mrb[0].mxu0
        %v493 = vadd.f32 0.0, %v492
        %v494 = vpop.f32.mrb[0].mxu0
        %495 = vmatprep.mubr.f32.mxu0 0.0
        %496 = vmatmul.mubr.f32.gmra.mrb[0].mxu0 %v263
        %v497 = vpop.f32.mrb[0].mxu0
        %v498 = vadd.f32 0.0, %v497
        %v499 = vpop.f32.mrb[0].mxu0
        %500 = vmatprep.mubr.f32.mxu0 0.0
        %501 = vmatmul.mubr.f32.gmra.mrb[0].mxu0 %v264
        %v502 = vpop.f32.mrb[0].mxu0
        %v503 = vadd.f32 0.0, %v502
        %v504 = vpop.f32.mrb[0].mxu0
        %505 = vdwg.mxu0
        %v506 = vld [vmem:[%s2] sm:$0x1]
        %v508 = vlaneseq
        %v509 = vshrl.u32 %v508, 7
        %v510 = vsub.s32 0, %v509
        %v511 = vrot.slane %v506, %v510
        %v513 = vmul.f32 %v348, %v511
        %v514 = vmul.f32 %v353, %v511
        %v515 = vmul.f32 %v358, %v511
        %v516 = vmul.f32 %v363, %v511
        %v517 = vmul.f32 %v368, %v511
        %v518 = vmul.f32 %v373, %v511
        %v519 = vmul.f32 %v378, %v511
        %v520 = vmul.f32 %v383, %v511
        %v521 = vmul.f32 %v388, %v511
        %v522 = vmul.f32 %v393, %v511
        %v523 = vmul.f32 %v398, %v511
        %v524 = vmul.f32 %v403, %v511
        %v525 = vmul.f32 %v408, %v511
        %v526 = vmul.f32 %v413, %v511
        %v527 = vmul.f32 %v418, %v511
        %v528 = vmul.f32 %v423, %v511
        %v529 = vmul.f32 %v428, %v511
        %v530 = vmul.f32 %v433, %v511
        %v531 = vmul.f32 %v438, %v511
        %v532 = vmul.f32 %v443, %v511
        %v533 = vmul.f32 %v448, %v511
        %v534 = vmul.f32 %v453, %v511
        %v535 = vmul.f32 %v458, %v511
        %v536 = vmul.f32 %v463, %v511
        %v537 = vmul.f32 %v468, %v511
        %v538 = vmul.f32 %v473, %v511
        %v539 = vmul.f32 %v478, %v511
        %v540 = vmul.f32 %v483, %v511
        %v541 = vmul.f32 %v488, %v511
        %v542 = vmul.f32 %v493, %v511
        %v543 = vmul.f32 %v498, %v511
        %v544 = vmul.f32 %v503, %v511
        %v545 = vld [vmem:[%s3] sm:$0x1]
        %v547 = vlaneseq
        %v548 = vshrl.u32 %v547, 7
        %v549 = vsub.s32 0, %v548
        %v550 = vrot.slane %v545, %v549
        %v552 = vadd.f32 %v513, %v550
        %v553 = vadd.f32 %v514, %v550
        %v554 = vadd.f32 %v515, %v550
        %v555 = vadd.f32 %v516, %v550
        %v556 = vadd.f32 %v517, %v550
        %v557 = vadd.f32 %v518, %v550
        %v558 = vadd.f32 %v519, %v550
        %v559 = vadd.f32 %v520, %v550
        %v560 = vadd.f32 %v521, %v550
        %v561 = vadd.f32 %v522, %v550
        %v562 = vadd.f32 %v523, %v550
        %v563 = vadd.f32 %v524, %v550
        %v564 = vadd.f32 %v525, %v550
        %v565 = vadd.f32 %v526, %v550
        %v566 = vadd.f32 %v527, %v550
        %v567 = vadd.f32 %v528, %v550
        %v568 = vadd.f32 %v529, %v550
        %v569 = vadd.f32 %v530, %v550
        %v570 = vadd.f32 %v531, %v550
        %v571 = vadd.f32 %v532, %v550
        %v572 = vadd.f32 %v533, %v550
        %v573 = vadd.f32 %v534, %v550
        %v574 = vadd.f32 %v535, %v550
        %v575 = vadd.f32 %v536, %v550
        %v576 = vadd.f32 %v537, %v550
        %v577 = vadd.f32 %v538, %v550
        %v578 = vadd.f32 %v539, %v550
        %v579 = vadd.f32 %v540, %v550
        %v580 = vadd.f32 %v541, %v550
        %v581 = vadd.f32 %v542, %v550
        %v582 = vadd.f32 %v543, %v550
        %v583 = vadd.f32 %v544, %v550
        %v584 = vmax.f32 %v552, 0.0
        %v585 = vmax.f32 %v553, 0.0
        %v586 = vmax.f32 %v554, 0.0
        %v587 = vmax.f32 %v555, 0.0
        %v588 = vmax.f32 %v556, 0.0
        %v589 = vmax.f32 %v557, 0.0
        %v590 = vmax.f32 %v558, 0.0
        %v591 = vmax.f32 %v559, 0.0
        %v592 = vmax.f32 %v560, 0.0
        %v593 = vmax.f32 %v561, 0.0
        %v594 = vmax.f32 %v562, 0.0
        %v595 = vmax.f32 %v563, 0.0
        %v596 = vmax.f32 %v564, 0.0
        %v597 = vmax.f32 %v565, 0.0
        %v598 = vmax.f32 %v566, 0.0
        %v599 = vmax.f32 %v567, 0.0
        %v600 = vmax.f32 %v568, 0.0
        %v601 = vmax.f32 %v569, 0.0
        %v602 = vmax.f32 %v570, 0.0
        %v603 = vmax.f32 %v571, 0.0
        %v604 = vmax.f32 %v572, 0.0
        %v605 = vmax.f32 %v573, 0.0
        %v606 = vmax.f32 %v574, 0.0
        %v607 = vmax.f32 %v575, 0.0
        %v608 = vmax.f32 %v576, 0.0
        %v609 = vmax.f32 %v577, 0.0
        %v610 = vmax.f32 %v578, 0.0
        %v611 = vmax.f32 %v579, 0.0
        %v612 = vmax.f32 %v580, 0.0
        %v613 = vmax.f32 %v581, 0.0
        %v614 = vmax.f32 %v582, 0.0
        %v615 = vmax.f32 %v583, 0.0
        %v616 = vpack.c.bf16 %v585, %v584
        %v617 = vpack.c.bf16 %v587, %v586
        %v618 = vpack.c.bf16 %v589, %v588
        %v619 = vpack.c.bf16 %v591, %v590
        %v620 = vpack.c.bf16 %v593, %v592
        %v621 = vpack.c.bf16 %v595, %v594
        %v622 = vpack.c.bf16 %v597, %v596
        %v623 = vpack.c.bf16 %v599, %v598
        %v624 = vpack.c.bf16 %v601, %v600
        %v625 = vpack.c.bf16 %v603, %v602
        %v626 = vpack.c.bf16 %v605, %v604
        %v627 = vpack.c.bf16 %v607, %v606
        %v628 = vpack.c.bf16 %v609, %v608
        %v629 = vpack.c.bf16 %v611, %v610
        %v630 = vpack.c.bf16 %v613, %v612
        %v631 = vpack.c.bf16 %v615, %v614
        %v648 = vunpack.c.l.b16 %v616
        %v649 = vunpack.c.h.b16 %v616
        %v650 = vunpack.c.l.b16 %v617
        %v651 = vunpack.c.h.b16 %v617
        %v652 = vunpack.c.l.b16 %v618
        %v653 = vunpack.c.h.b16 %v618
        %v654 = vunpack.c.l.b16 %v619
        %v655 = vunpack.c.h.b16 %v619
        %v656 = vunpack.c.l.b16 %v620
        %v657 = vunpack.c.h.b16 %v620
        %v658 = vunpack.c.l.b16 %v621
        %v659 = vunpack.c.h.b16 %v621
        %v660 = vunpack.c.l.b16 %v622
        %v661 = vunpack.c.h.b16 %v622
        %v662 = vunpack.c.l.b16 %v623
        %v663 = vunpack.c.h.b16 %v623
        %v664 = vunpack.c.l.b16 %v624
        %v665 = vunpack.c.h.b16 %v624
        %v666 = vunpack.c.l.b16 %v625
        %v667 = vunpack.c.h.b16 %v625
        %v668 = vunpack.c.l.b16 %v626
        %v669 = vunpack.c.h.b16 %v626
        %v670 = vunpack.c.l.b16 %v627
        %v671 = vunpack.c.h.b16 %v627
        %v672 = vunpack.c.l.b16 %v628
        %v673 = vunpack.c.h.b16 %v628
        %v674 = vunpack.c.l.b16 %v629
        %v675 = vunpack.c.h.b16 %v629
        %v676 = vunpack.c.l.b16 %v630
        %v677 = vunpack.c.h.b16 %v630
        %v678 = vunpack.c.l.b16 %v631
        %v679 = vunpack.c.h.b16 %v631
        %v680 = vpack.c.b16 %v648, %v648
        %v681 = vpack.c.b16 %v649, %v649
        %v682 = vpack.c.b16 %v650, %v650
        %v683 = vpack.c.b16 %v651, %v651
        %v684 = vpack.c.b16 %v652, %v652
        %v685 = vpack.c.b16 %v653, %v653
        %v686 = vpack.c.b16 %v654, %v654
        %v687 = vpack.c.b16 %v655, %v655
        %v688 = vpack.c.b16 %v656, %v656
        %v689 = vpack.c.b16 %v657, %v657
        %v690 = vpack.c.b16 %v658, %v658
        %v691 = vpack.c.b16 %v659, %v659
        %v692 = vpack.c.b16 %v660, %v660
        %v693 = vpack.c.b16 %v661, %v661
        %v694 = vpack.c.b16 %v662, %v662
        %v695 = vpack.c.b16 %v663, %v663
        %v696 = vpack.c.b16 %v664, %v664
        %v697 = vpack.c.b16 %v665, %v665
        %v698 = vpack.c.b16 %v666, %v666
        %v699 = vpack.c.b16 %v667, %v667
        %v700 = vpack.c.b16 %v668, %v668
        %v701 = vpack.c.b16 %v669, %v669
        %v702 = vpack.c.b16 %v670, %v670
        %v703 = vpack.c.b16 %v671, %v671
        %v704 = vpack.c.b16 %v672, %v672
        %v705 = vpack.c.b16 %v673, %v673
        %v706 = vpack.c.b16 %v674, %v674
        %v707 = vpack.c.b16 %v675, %v675
        %v708 = vpack.c.b16 %v676, %v676
        %v709 = vpack.c.b16 %v677, %v677
        %v710 = vpack.c.b16 %v678, %v678
        %v711 = vpack.c.b16 %v679, %v679
        %744 = vst [vmem:[%s230] sm:$0xf] %v680
        %745 = vst [vmem:[%s230 + $0x4] sm:$0xf] %v681
        %746 = vst [vmem:[%s230 + $0x8] sm:$0xf] %v682
        %747 = vst [vmem:[%s230 + $0xc] sm:$0xf] %v683
        %748 = vst [vmem:[%s230 + $0x10] sm:$0xf] %v684
        %749 = vst [vmem:[%s230 + $0x14] sm:$0xf] %v685
        %750 = vst [vmem:[%s230 + $0x18] sm:$0xf] %v686
        %751 = vst [vmem:[%s230 + $0x1c] sm:$0xf] %v687
        %752 = vst [vmem:[%s230 + $0x20] sm:$0xf] %v688
        %753 = vst [vmem:[%s230 + $0x24] sm:$0xf] %v689
        %754 = vst [vmem:[%s230 + $0x28] sm:$0xf] %v690
        %755 = vst [vmem:[%s230 + $0x2c] sm:$0xf] %v691
        %756 = vst [vmem:[%s230 + $0x30] sm:$0xf] %v692
        %757 = vst [vmem:[%s230 + $0x34] sm:$0xf] %v693
        %758 = vst [vmem:[%s230 + $0x38] sm:$0xf] %v694
        %759 = vst [vmem:[%s230 + $0x3c] sm:$0xf] %v695
        %760 = vst [vmem:[%s230 + $0x40] sm:$0xf] %v696
        %761 = vst [vmem:[%s230 + $0x44] sm:$0xf] %v697
        %762 = vst [vmem:[%s230 + $0x48] sm:$0xf] %v698
        %763 = vst [vmem:[%s230 + $0x4c] sm:$0xf] %v699
        %764 = vst [vmem:[%s230 + $0x50] sm:$0xf] %v700
        %765 = vst [vmem:[%s230 + $0x54] sm:$0xf] %v701
        %766 = vst [vmem:[%s230 + $0x58] sm:$0xf] %v702
        %767 = vst [vmem:[%s230 + $0x5c] sm:$0xf] %v703
        %768 = vst [vmem:[%s230 + $0x60] sm:$0xf] %v704
        %769 = vst [vmem:[%s230 + $0x64] sm:$0xf] %v705
        %770 = vst [vmem:[%s230 + $0x68] sm:$0xf] %v706
        %771 = vst [vmem:[%s230 + $0x6c] sm:$0xf] %v707
        %772 = vst [vmem:[%s230 + $0x70] sm:$0xf] %v708
        %773 = vst [vmem:[%s230 + $0x74] sm:$0xf] %v709
        %774 = vst [vmem:[%s230 + $0x78] sm:$0xf] %v710
        %775 = vst [vmem:[%s230 + $0x7c] sm:$0xf] %v711
        %s776 = sand.u32 %s119, 1
        %s777 = scalar_lea.sflag [#allocation4], %s776
        %s778 = sand.u32 %s119, 1
        %s779 = smul.addr %s778, 128
        %s780 = scalar_lea.vmem [#allocation7], %s779
        // Predicated region
        $region45: #{tpu_custom_call.1} parent=35 // pred_check
          %p781 = pneg %p129
        $region46: #{tpu_custom_call.1} parent=35 // pred_check_branch
          %783 = sbr.rel (%p781) target = $region48
        $region47: #{tpu_custom_call.1} parent=35 // pred_region
          %s784 = smul.u32 32, %s22
          %s786 = ssub.s32 2048, 2048
          %787 = vsyncadd %s777, %s786
          %s788 = smul.addr %s784, 64
          %s789 = scalar_lea.hbm %s4, %s788
          %s790 = sshll.u32 %s780, 4
          %s791 = int_to_ptr.vmem [resolvable:$true] %s790
          %796 = dma.vmem_to_hbm [thread:$0]  %s791, 2048, %s789, %s777, 64, 64, 4
        $region48: #{tpu_custom_call.1} parent=35 // pred_fallthru
          _
      $region36: #{tpu_custom_call.1} parent=5 // pred_fallthru
        _
      %p797 = scmp.le.s32.totalorder 2, %s17
      // Predicated region
      $region49: #{tpu_custom_call.1} parent=5 // pred_check
        %p798 = pneg %p797
      $region50: #{tpu_custom_call.1} parent=5 // pred_check_branch
        %800 = sbr.rel (%p798) target = $region52
      $region51: #{tpu_custom_call.1} parent=5 // pred_region
        %s801 = ssub.s32 %s17, 2
        // Predicated region
        $region53: #{tpu_custom_call.1} parent=51 // pred_check
          %p802 = pneg %p135
        $region54: #{tpu_custom_call.1} parent=51 // pred_check_branch
          %804 = sbr.rel (%p802) target = $region56
        $region55: #{tpu_custom_call.1} parent=51 // pred_region
          %s805 = sand.u32 %s120, 1
          %s806 = scalar_lea.sflag [#allocation4], %s805
          %s807 = sand.u32 %s120, 1
          %s808 = smul.addr %s807, 128
          %s809 = scalar_lea.vmem [#allocation7], %s808
          %810 = dma.done %s806, 2048
        $region56: #{tpu_custom_call.1} parent=51 // pred_fallthru
          _
      $region52: #{tpu_custom_call.1} parent=5 // pred_fallthru
        _
    $region6: #{tpu_custom_call.1} parent=1 // loop_footer
      %s21 = sadd.s32 1, %s17
    $region7: #{tpu_custom_call.1} parent=1 // loop_footer_branch
      %16 = sbr.rel target = $region3
    $region8: #{tpu_custom_call.1} parent=1 // loop_exit
      _
    %811 = vsyncpa [#allocation3], 1
    %s812 = scalar_lea.sflag [#allocation3], 1
    %813 = vsyncpa %s812, 1
    %814 = vsyncpa [#allocation6], 1
    %815 = vsyncpa [#allocation4], 1
    %s816 = scalar_lea.sflag [#allocation4], 1
    %817 = vsyncpa %s816, 1

</llo_original>
